<compile_context>
chip_gen: v6e
topology: v6e:2x2x1
jax: 0.10.0
libtpu: 0.0.40
codegen_flags: <defaults>
</compile_context>

<pallas_src>
import functools

import jax
import jax.numpy as jnp
from jax.experimental import pallas as pl
from jax.experimental.pallas import tpu as pltpu


_LANE = 128
# Target ~2 MiB per block (f32): fits every generation's default scoped-VMEM
# budget with double-buffered in+out, and saturates HBM for streaming ops.
_TARGET_BLOCK_BYTES = 2 * 1024 * 1024


def _compress_kernel(x_ref, o_ref):
    # Elementwise compression hot path: simulate bf16 storage precision.
    o_ref[...] = x_ref[...].astype(jnp.bfloat16).astype(jnp.float32)


def _choose_layout(n: int):
    """Pick (rows, width, block_rows) for a lane-dense 2D slab of n f32 elems."""
    # Widest lane dim (multiple of 128) that divides n exactly -> zero-copy reshape.
    width = _LANE
    for w in (4096, 2048, 1024, 512, 256, 128):
        if n % w == 0:
            width = w
            break
    rows = n // width
    # ~2 MiB blocks; sublane extent a multiple of 8 (the cdiv grid masks any
    # partial trailing block), or the full row extent for small tensors.
    block_rows = max(8, (_TARGET_BLOCK_BYTES // (width * 4)) // 8 * 8)
    if block_rows >= rows:
        block_rows = rows
    return rows, width, block_rows


def _run_compress(x2d: jnp.ndarray, block_rows: int, *, in_place: bool) -> jnp.ndarray:
    rows, width = x2d.shape
    grid = (pl.cdiv(rows, block_rows),)
    # Only alias input->output when the operand is a fresh intermediate
    # (cast or pad produced a new buffer). Aliasing a live, non-donated input
    # would force XLA to insert a defensive copy: an extra full HBM pass that
    # costs more than the separate output allocation it saves.
    extra = {"input_output_aliases": {0: 0}} if in_place else {}
    return pl.pallas_call(
        _compress_kernel,
        out_shape=jax.ShapeDtypeStruct((rows, width), jnp.float32),
        grid_spec=pltpu.PrefetchScalarGridSpec(
            num_scalar_prefetch=0,
            grid=grid,
            in_specs=[pl.BlockSpec((block_rows, width), lambda i: (i, 0))],
            out_specs=pl.BlockSpec((block_rows, width), lambda i: (i, 0)),
        ),
        compiler_params=pltpu.CompilerParams(
            dimension_semantics=("parallel",)),
        **extra,
    )(x2d)


@functools.partial(jax.jit, static_argnames=("forward",))
def compressor_forward(x: jnp.ndarray, *, forward: bool = True) -> jnp.ndarray:
    """Pallas equivalent of Compressor(compress_fn, forward=...)(x)."""
    if not forward:
        return x
    assert jnp.issubdtype(x.dtype, jnp.floating), (
        "Compressor compress_fn operates on floating-point tensors")

    orig_shape = x.shape
    orig_dtype = x.dtype
    n = x.size

    flat = jnp.ravel(x).astype(jnp.float32)

    if n % _LANE == 0:
        # Common case: zero-copy reshape to a lane-dense slab, cdiv grid masks
        # the partial last block -> no pad / tail-slice HBM passes.
        rows, width, block_rows = _choose_layout(n)
        fresh = orig_dtype != jnp.float32  # the astype above made a new buffer
        out2d = _run_compress(flat.reshape(rows, width), block_rows,
                              in_place=fresh)
        out = out2d.reshape(orig_shape)
    else:
        # Rare ragged case: pad only the sub-128-element remainder.
        pad = (-n) % _LANE
        flat = jnp.pad(flat, (0, pad))
        rows, width, block_rows = _choose_layout(n + pad)
        out2d = _run_compress(flat.reshape(rows, width), block_rows,
                              in_place=True)
        out = out2d.reshape(-1)[:n].reshape(orig_shape)

    return out.astype(orig_dtype)


def compressor_forward_ref(x: jnp.ndarray) -> jnp.ndarray:
    """Pure-JAX reference of the same compress_fn."""
    return x.astype(jnp.bfloat16).astype(x.dtype)


if __name__ == "__main__":
    key = jax.random.PRNGKey(0)
    # Small NCHW activation tensor, consistent with the module's usage.
    x = jax.random.normal(key, (2, 4, 16, 16), dtype=jnp.float32)

    y = compressor_forward(x)
    y = jax.block_until_ready(y)

    y_ref = compressor_forward_ref(x)
    assert y.shape == x.shape and y.dtype == x.dtype
    assert jnp.array_equal(y, y_ref), "Pallas compressor mismatch vs reference"

    print("KERNEL_OK")
</pallas_src>

<mosaic_0001>
module attributes {stable_mosaic.version = 11 : i64} {
  func.func @_compress_kernel(%arg0: i32, %arg1: memref<1x2048xf32, #tpu.memory_space<vmem>>, %arg2: memref<1x2048xf32, #tpu.memory_space<vmem>>) attributes {dimension_semantics = [#tpu.dimension_semantics<parallel>], iteration_bounds = array<i64: 1>, scalar_prefetch = 0 : i64, scratch_operands = 0 : i64, tpu.core_type = #tpu.core_type<tc>, window_params = [{transform_indices = @transform_0, window_bounds = array<i64: 1, 2048>}, {transform_indices = @transform_1, window_bounds = array<i64: 1, 2048>}]} {
    %c0 = arith.constant 0 : index
    %c0_0 = arith.constant 0 : index
    %0 = vector.load %arg1[%c0, %c0_0] : memref<1x2048xf32, #tpu.memory_space<vmem>>, vector<1x2048xf32>
    %1 = arith.truncf %0 : vector<1x2048xf32> to vector<1x2048xbf16>
    %2 = arith.extf %1 : vector<1x2048xbf16> to vector<1x2048xf32>
    %c0_1 = arith.constant 0 : index
    %c0_2 = arith.constant 0 : index
    %3 = vector.load %arg2[%c0_1, %c0_2] : memref<1x2048xf32, #tpu.memory_space<vmem>>, vector<1x2048xf32>
    tpu.vector_store %arg2[%c0_1, %c0_2], %2 {strides = array<i32>} : memref<1x2048xf32, #tpu.memory_space<vmem>>, vector<1x2048xf32>,
    return
  }
  func.func @transform_0(%arg0: i32) -> (i32, i32) {
    %c0_i32 = arith.constant 0 : i32
    %c0_i32_0 = arith.constant 0 : i32
    return %arg0, %c0_i32 : i32, i32
  }
  func.func @transform_1(%arg0: i32) -> (i32, i32) {
    %c0_i32 = arith.constant 0 : i32
    %c0_i32_0 = arith.constant 0 : i32
    return %arg0, %c0_i32 : i32, i32
  }
}

</mosaic_0001>

<llo_original>
// kernel: compressor_forward.1
$region0: #{compressor_forward.1}
  #allocation0 [shape = 'u32[]', space=smem, size = 0x4, offset = 0x4, fixed_abs, tag = 'smem constant byte address 0x4 - core index']
  #allocation1 [shape = 'u32[144,128]{1,0:T(1,128)}', space=vmem, size = 0x12000, scoped, tag = 'internal scratch']
  %s0 = inlined_call_operand.vmem [shape: f32[1,2048], index: 0, kind: input, shape index: {}]
  %s1 = inlined_call_operand.vmem [shape: f32[1,2048], index: 1, kind: output, shape index: {}]
  %s2 = sld [smem:[#allocation0]]
  $region14: #{compressor_forward.1} parent=0
    _
  %s4 = ssub.s32 1, %s2
  %s5 = scalar_select 0, %s4, %s2
  // Predicated region
  $region2: #{compressor_forward.1} parent=0 // pred_check
    _
  $region3: #{compressor_forward.1} parent=0 // pred_check_branch
    %7 = sbr.rel (0) target = $region5
  $region4: #{compressor_forward.1} parent=0 // pred_region
    _
  $region5: #{compressor_forward.1} parent=0 // pred_fallthru
    _
  %v8 = vld [vmem:[%s0] sm:$0xff]
  %v9 = vld [vmem:[%s0 + $0x8] sm:$0xff]
  %v12 = vlaneseq
  %v13 = vshrl.u32 %v12, 7
  %v14 = vsub.s32 0, %v13
  %v15 = vrot.slane %v8, %v14
  %v16 = vlaneseq
  %v17 = vshrl.u32 %v16, 7
  %v18 = vsub.s32 1, %v17
  %v19 = vrot.slane %v8, %v18
  %v20 = vlaneseq
  %v21 = vshrl.u32 %v20, 7
  %v22 = vsub.s32 2, %v21
  %v23 = vrot.slane %v8, %v22
  %v24 = vlaneseq
  %v25 = vshrl.u32 %v24, 7
  %v26 = vsub.s32 3, %v25
  %v27 = vrot.slane %v8, %v26
  %v28 = vlaneseq
  %v29 = vshrl.u32 %v28, 7
  %v30 = vsub.s32 4, %v29
  %v31 = vrot.slane %v8, %v30
  %v32 = vlaneseq
  %v33 = vshrl.u32 %v32, 7
  %v34 = vsub.s32 5, %v33
  %v35 = vrot.slane %v8, %v34
  %v36 = vlaneseq
  %v37 = vshrl.u32 %v36, 7
  %v38 = vsub.s32 6, %v37
  %v39 = vrot.slane %v8, %v38
  %v40 = vlaneseq
  %v41 = vshrl.u32 %v40, 7
  %v42 = vsub.s32 7, %v41
  %v43 = vrot.slane %v8, %v42
  %v44 = vlaneseq
  %v45 = vshrl.u32 %v44, 7
  %v46 = vsub.s32 0, %v45
  %v47 = vrot.slane %v9, %v46
  %v48 = vlaneseq
  %v49 = vshrl.u32 %v48, 7
  %v50 = vsub.s32 1, %v49
  %v51 = vrot.slane %v9, %v50
  %v52 = vlaneseq
  %v53 = vshrl.u32 %v52, 7
  %v54 = vsub.s32 2, %v53
  %v55 = vrot.slane %v9, %v54
  %v56 = vlaneseq
  %v57 = vshrl.u32 %v56, 7
  %v58 = vsub.s32 3, %v57
  %v59 = vrot.slane %v9, %v58
  %v60 = vlaneseq
  %v61 = vshrl.u32 %v60, 7
  %v62 = vsub.s32 4, %v61
  %v63 = vrot.slane %v9, %v62
  %v64 = vlaneseq
  %v65 = vshrl.u32 %v64, 7
  %v66 = vsub.s32 5, %v65
  %v67 = vrot.slane %v9, %v66
  %v68 = vlaneseq
  %v69 = vshrl.u32 %v68, 7
  %v70 = vsub.s32 6, %v69
  %v71 = vrot.slane %v9, %v70
  %v72 = vlaneseq
  %v73 = vshrl.u32 %v72, 7
  %v74 = vsub.s32 7, %v73
  %v75 = vrot.slane %v9, %v74
  %v92 = vpack.c.bf16 %v15, %v15
  %v93 = vpack.c.bf16 %v19, %v19
  %v94 = vpack.c.bf16 %v23, %v23
  %v95 = vpack.c.bf16 %v27, %v27
  %v96 = vpack.c.bf16 %v31, %v31
  %v97 = vpack.c.bf16 %v35, %v35
  %v98 = vpack.c.bf16 %v39, %v39
  %v99 = vpack.c.bf16 %v43, %v43
  %v100 = vpack.c.bf16 %v47, %v47
  %v101 = vpack.c.bf16 %v51, %v51
  %v102 = vpack.c.bf16 %v55, %v55
  %v103 = vpack.c.bf16 %v59, %v59
  %v104 = vpack.c.bf16 %v63, %v63
  %v105 = vpack.c.bf16 %v67, %v67
  %v106 = vpack.c.bf16 %v71, %v71
  %v107 = vpack.c.bf16 %v75, %v75
  %v108 = vunpack.c.l.bf16 %v92
  %v109 = vunpack.c.l.bf16 %v93
  %v110 = vunpack.c.l.bf16 %v94
  %v111 = vunpack.c.l.bf16 %v95
  %v112 = vunpack.c.l.bf16 %v96
  %v113 = vunpack.c.l.bf16 %v97
  %v114 = vunpack.c.l.bf16 %v98
  %v115 = vunpack.c.l.bf16 %v99
  %v116 = vunpack.c.l.bf16 %v100
  %v117 = vunpack.c.l.bf16 %v101
  %v118 = vunpack.c.l.bf16 %v102
  %v119 = vunpack.c.l.bf16 %v103
  %v120 = vunpack.c.l.bf16 %v104
  %v121 = vunpack.c.l.bf16 %v105
  %v122 = vunpack.c.l.bf16 %v106
  %v123 = vunpack.c.l.bf16 %v107
  %v140 = vcombine.low %v108, %v109
  %v141 = vcombine.low %v110, %v111
  %v142 = vcombine.low %v112, %v113
  %v143 = vcombine.low %v114, %v115
  %v145 = vunpack.c.l.s4 1966171168
  %v146 = vunpack.c.0.s8 %v145
  %v147 = vlaneseq
  %v148 = vshrl.u32 %v147, 7
  %v149 = vsub.s32 %v146, %v148
  %v150 = vrot.slane %v140, %v149
  %v152 = vunpack.c.l.s4 1966171168
  %v153 = vunpack.c.0.s8 %v152
  %v154 = vlaneseq
  %v155 = vshrl.u32 %v154, 7
  %v156 = vsub.s32 %v153, %v155
  %v157 = vrot.slane %v141, %v156
  %v159 = vunpack.c.l.s4 1966171168
  %v160 = vunpack.c.0.s8 %v159
  %v161 = vlaneseq
  %v162 = vshrl.u32 %v161, 7
  %v163 = vsub.s32 %v160, %v162
  %v164 = vrot.slane %v142, %v163
  %v166 = vunpack.c.l.s4 1966171168
  %v167 = vunpack.c.0.s8 %v166
  %v168 = vlaneseq
  %v169 = vshrl.u32 %v168, 7
  %v170 = vsub.s32 %v167, %v169
  %v171 = vrot.slane %v143, %v170
  %v172 = vcombine.low %v150, %v157
  %v173 = vcombine.low %v164, %v171
  %v175 = vunpack.c.l.s4 1966171168
  %v176 = vunpack.c.0.s8 %v175
  %v177 = vlaneseq
  %v178 = vshrl.u32 %v177, 7
  %v179 = vsub.s32 %v176, %v178
  %v180 = vrot.slane %v172, %v179
  %v182 = vunpack.c.l.s4 1966171168
  %v183 = vunpack.c.0.s8 %v182
  %v184 = vlaneseq
  %v185 = vshrl.u32 %v184, 7
  %v186 = vsub.s32 %v183, %v185
  %v187 = vrot.slane %v173, %v186
  %v188 = vcombine.low %v180, %v187
  %v189 = vcombine.low %v116, %v117
  %v190 = vcombine.low %v118, %v119
  %v191 = vcombine.low %v120, %v121
  %v192 = vcombine.low %v122, %v123
  %v194 = vunpack.c.l.s4 1966171168
  %v195 = vunpack.c.0.s8 %v194
  %v196 = vlaneseq
  %v197 = vshrl.u32 %v196, 7
  %v198 = vsub.s32 %v195, %v197
  %v199 = vrot.slane %v189, %v198
  %v201 = vunpack.c.l.s4 1966171168
  %v202 = vunpack.c.0.s8 %v201
  %v203 = vlaneseq
  %v204 = vshrl.u32 %v203, 7
  %v205 = vsub.s32 %v202, %v204
  %v206 = vrot.slane %v190, %v205
  %v208 = vunpack.c.l.s4 1966171168
  %v209 = vunpack.c.0.s8 %v208
  %v210 = vlaneseq
  %v211 = vshrl.u32 %v210, 7
  %v212 = vsub.s32 %v209, %v211
  %v213 = vrot.slane %v191, %v212
  %v215 = vunpack.c.l.s4 1966171168
  %v216 = vunpack.c.0.s8 %v215
  %v217 = vlaneseq
  %v218 = vshrl.u32 %v217, 7
  %v219 = vsub.s32 %v216, %v218
  %v220 = vrot.slane %v192, %v219
  %v221 = vcombine.low %v199, %v206
  %v222 = vcombine.low %v213, %v220
  %v224 = vunpack.c.l.s4 1966171168
  %v225 = vunpack.c.0.s8 %v224
  %v226 = vlaneseq
  %v227 = vshrl.u32 %v226, 7
  %v228 = vsub.s32 %v225, %v227
  %v229 = vrot.slane %v221, %v228
  %v231 = vunpack.c.l.s4 1966171168
  %v232 = vunpack.c.0.s8 %v231
  %v233 = vlaneseq
  %v234 = vshrl.u32 %v233, 7
  %v235 = vsub.s32 %v232, %v234
  %v236 = vrot.slane %v222, %v235
  %v237 = vcombine.low %v229, %v236
  %240 = vst [vmem:[%s1] sm:$0xff] %v188
  %241 = vst [vmem:[%s1 + $0x8] sm:$0xff] %v237
  // Predicated region
  $region6: #{compressor_forward.1} parent=0 // pred_check
    _
  $region7: #{compressor_forward.1} parent=0 // pred_check_branch
    %243 = sbr.rel (0) target = $region9
  $region8: #{compressor_forward.1} parent=0 // pred_region
    _
  $region9: #{compressor_forward.1} parent=0 // pred_fallthru
    _
  // Predicated region
  $region10: #{compressor_forward.1} parent=0 // pred_check
    _
  $region11: #{compressor_forward.1} parent=0 // pred_check_branch
    %245 = sbr.rel (0) target = $region13
  $region12: #{compressor_forward.1} parent=0 // pred_region
    _
  $region13: #{compressor_forward.1} parent=0 // pred_fallthru
    _

</llo_original>
